<compile_context>
chip_gen: v5e
topology: v5e:2x2
jax: 0.10.0
libtpu: 0.0.40
codegen_flags: <defaults>
</compile_context>

<pallas_src>
import functools

import jax
import jax.numpy as jnp
from jax.experimental import pallas as pl
from jax.experimental.pallas import tpu as pltpu


def _copy_kernel(x_ref, o_ref):
    # Identity copy of the current (block_rows, C) tile.
    o_ref[...] = x_ref[...]


def _resolve_shape(total, shape):
    """Resolve a torch-style view shape (supports a single -1)."""
    shape = list(shape)
    if shape.count(-1) > 1:
        raise ValueError("only one -1 allowed in view shape")
    if -1 in shape:
        known = 1
        for s in shape:
            if s != -1:
                known *= s
        if known == 0 or total % known != 0:
            raise ValueError(f"cannot view {total} elements as {shape}")
        shape[shape.index(-1)] = total // known
    prod = 1
    for s in shape:
        prod *= s
    if prod != total:
        raise ValueError(f"cannot view {total} elements as {shape}")
    return tuple(shape)


@functools.partial(jax.jit, static_argnums=1)
def pallas_view(x, shape):
    """Equivalent of torch.Tensor.view(*shape); data movement done by a tiled
    lane-dense Pallas identity-copy kernel, shape change is metadata only."""
    total = int(x.size)
    target = _resolve_shape(total, shape)
    itemsize = x.dtype.itemsize

    flat = x.reshape(total)

    # ---- choose a wide, lane-dense column width C (multiple of 128) --------
    C = None
    if total % 128 == 0:
        for cand in (4096, 2048, 1024, 512, 256, 128):
            if total % cand == 0:
                C = cand
                break
    if C is None:
        # Ragged total: pad up to a multiple of 1024 lanes, slice off later.
        C = 1024

    rows = -(-total // C)  # ceil

    # ---- choose row tile so each block is ~2 MiB ---------------------------
    # 2 inputs+outputs x 2 double-buffers x 2 MiB = 8 MiB < 16 MiB v5e default.
    target_block_bytes = 2 * 1024 * 1024
    tile_r = (target_block_bytes // (C * itemsize)) // 8 * 8
    tile_r = max(8, tile_r)

    if rows <= tile_r:
        block_rows = rows          # full-extent block: no (8,128) constraint
        rows_padded = rows
        grid_rows = 1
    else:
        block_rows = tile_r        # multiple of 8 -> legal block shape
        rows_padded = -(-rows // tile_r) * tile_r
        grid_rows = rows_padded // tile_r

    padded_total = rows_padded * C
    if padded_total != total:
        flat = jnp.pad(flat, (0, padded_total - total))

    slab = flat.reshape(rows_padded, C)

    out_slab = pl.pallas_call(
        _copy_kernel,
        out_shape=jax.ShapeDtypeStruct(slab.shape, slab.dtype),
        grid_spec=pltpu.PrefetchScalarGridSpec(
            num_scalar_prefetch=0,
            grid=(grid_rows,),
            in_specs=[pl.BlockSpec((block_rows, C), lambda i: (i, 0))],
            out_specs=pl.BlockSpec((block_rows, C), lambda i: (i, 0)),
        ),
        compiler_params=pltpu.CompilerParams(
            dimension_semantics=("parallel",),  # shards rows across v7x TCs
        ),
        cost_estimate=pl.CostEstimate(
            flops=0,
            transcendentals=0,
            bytes_accessed=2 * padded_total * itemsize,
        ),
    )(slab)

    out_flat = out_slab.reshape(padded_total)
    if padded_total != total:
        out_flat = out_flat[:total]

    # Final reshape to the requested view shape (metadata only).
    return out_flat.reshape(target)


if __name__ == "__main__":
    key = jax.random.PRNGKey(0)

    # Case 1: NCHW-like input as used in the head (flatten per-batch features).
    x = jax.random.normal(key, (2, 4, 16, 16), dtype=jnp.float32)
    y = pallas_view(x, (2, -1))
    y = jax.block_until_ready(y)
    y_ref = x.reshape(2, -1)
    assert y.shape == (2, 4 * 16 * 16), y.shape
    assert y.dtype == x.dtype
    assert bool(jnp.array_equal(y, y_ref)), "mismatch vs reference reshape (case 1)"

    # Case 2: ragged size (not a multiple of 128) exercises the padded path.
    z = jax.random.normal(jax.random.PRNGKey(1), (3, 5, 7), dtype=jnp.float32)
    w = pallas_view(z, (-1,))
    w = jax.block_until_ready(w)
    assert w.shape == (3 * 5 * 7,), w.shape
    assert bool(jnp.array_equal(w, z.reshape(-1))), "mismatch vs reference reshape (case 2)"

    # Case 3: bf16 input, different target rank.
    u = jax.random.normal(jax.random.PRNGKey(2), (2, 8, 32), dtype=jnp.bfloat16)
    v = pallas_view(u, (2, 8, 4, 8))
    v = jax.block_until_ready(v)
    assert v.shape == (2, 8, 4, 8), v.shape
    assert v.dtype == u.dtype
    assert bool(jnp.array_equal(v, u.reshape(2, 8, 4, 8))), "mismatch (case 3)"

    print("KERNEL_OK")
</pallas_src>

<mosaic_0001>
module attributes {stable_mosaic.version = 11 : i64} {
  func.func @_copy_kernel(%arg0: i32, %arg1: memref<1x2048xf32, #tpu.memory_space<vmem>>, %arg2: memref<1x2048xf32, #tpu.memory_space<vmem>>) attributes {dimension_semantics = [#tpu.dimension_semantics<parallel>], iteration_bounds = array<i64: 1>, scalar_prefetch = 0 : i64, scratch_operands = 0 : i64, tpu.core_type = #tpu.core_type<tc>, window_params = [{transform_indices = @transform_0, window_bounds = array<i64: 1, 2048>}, {transform_indices = @transform_1, window_bounds = array<i64: 1, 2048>}]} {
    %c0 = arith.constant 0 : index
    %c0_0 = arith.constant 0 : index
    %0 = vector.load %arg1[%c0, %c0_0] : memref<1x2048xf32, #tpu.memory_space<vmem>>, vector<1x2048xf32>
    %c0_1 = arith.constant 0 : index
    %c0_2 = arith.constant 0 : index
    %1 = vector.load %arg2[%c0_1, %c0_2] : memref<1x2048xf32, #tpu.memory_space<vmem>>, vector<1x2048xf32>
    tpu.vector_store %arg2[%c0_1, %c0_2], %0 {strides = array<i32>} : memref<1x2048xf32, #tpu.memory_space<vmem>>, vector<1x2048xf32>,
    return
  }
  func.func @transform_0(%arg0: i32) -> (i32, i32) {
    %c0_i32 = arith.constant 0 : i32
    %c0_i32_0 = arith.constant 0 : i32
    return %arg0, %c0_i32 : i32, i32
  }
  func.func @transform_1(%arg0: i32) -> (i32, i32) {
    %c0_i32 = arith.constant 0 : i32
    %c0_i32_0 = arith.constant 0 : i32
    return %arg0, %c0_i32 : i32, i32
  }
}

</mosaic_0001>

<llo_original>
// kernel: pallas_view.1
$region0: #{pallas_view.1}
  #allocation0 [shape = 'u32[]', space=smem, size = 0x4, offset = 0x4, fixed_abs, tag = 'smem constant byte address 0x4 - core index']
  #allocation1 [shape = 'u32[72,128]{1,0:T(1,128)}', space=vmem, size = 0x9000, scoped, tag = 'internal scratch']
  %s0 = inlined_call_operand.vmem [shape: f32[1,2048], index: 0, kind: input, shape index: {}]
  %s1 = inlined_call_operand.vmem [shape: f32[1,2048], index: 1, kind: output, shape index: {}]
  %s2 = sld [smem:[#allocation0]]
  $region14: #{pallas_view.1} parent=0
    _
  %s4 = ssub.s32 1, %s2
  %s5 = scalar_select 0, %s4, %s2
  // Predicated region
  $region2: #{pallas_view.1} parent=0 // pred_check
    _
  $region3: #{pallas_view.1} parent=0 // pred_check_branch
    %7 = sbr.rel (0) target = $region5
  $region4: #{pallas_view.1} parent=0 // pred_region
    _
  $region5: #{pallas_view.1} parent=0 // pred_fallthru
    _
  %v8 = vld [vmem:[%s0] sm:$0xff]
  %v9 = vld [vmem:[%s0 + $0x8] sm:$0xff]
  %10 = vst [vmem:[%s1] sm:$0xff] %v8
  %11 = vst [vmem:[%s1 + $0x8] sm:$0xff] %v9
  // Predicated region
  $region6: #{pallas_view.1} parent=0 // pred_check
    _
  $region7: #{pallas_view.1} parent=0 // pred_check_branch
    %13 = sbr.rel (0) target = $region9
  $region8: #{pallas_view.1} parent=0 // pred_region
    _
  $region9: #{pallas_view.1} parent=0 // pred_fallthru
    _
  // Predicated region
  $region10: #{pallas_view.1} parent=0 // pred_check
    _
  $region11: #{pallas_view.1} parent=0 // pred_check_branch
    %15 = sbr.rel (0) target = $region13
  $region12: #{pallas_view.1} parent=0 // pred_region
    _
  $region13: #{pallas_view.1} parent=0 // pred_fallthru
    _

</llo_original>
